<compile_context>
chip_gen: v7x
topology: tpu7x:2x2x1
jax: 0.10.0
libtpu: 0.0.40
codegen_flags: <defaults>
</compile_context>

<pallas_src>
import functools
import math

import jax
import jax.numpy as jnp
from jax.experimental import pallas as pl
from jax.experimental.pallas import tpu as pltpu


def _round_up(x, m):
    return ((x + m - 1) // m) * m


def _pick_class_tile(C, candidates=(512, 256, 128)):
    """Largest lane-dense class tile that divides C (avoids padding W)."""
    for t in candidates:
        if C % t == 0:
            return t
    return min(candidates[0], _round_up(C, 128))   # fallback: pad classes


def _pick_k_tile(D, full_thresh=2048, candidates=(1024, 512, 256, 128)):
    """Feature (contracting) tile. Full-D block while it comfortably fits."""
    if D <= full_thresh:
        return D                                    # single K step, no D pad
    for t in candidates:
        if D % t == 0:
            return t
    return 512                                      # fallback: pad D


def _default_vmem_limit():
    cap = None
    try:
        cap = pltpu.get_tpu_info().vmem_capacity_bytes
    except Exception:
        cap = None
    if not cap:
        cap = 64 * 1024 * 1024                      # conservative: v7x per-TC
    # ~70% of physical (44 MiB on v7x), capped at 96 MiB on v5e/v6e.
    return min(int(cap) * 7 // 10, 96 * 1024 * 1024)


def _linear_ce_kernel(x_ref, w_ref, lbl_ref, *refs,
                      nc, nk, n_rows, n_classes,
                      rows_padded, classes_padded, with_logits):
    """One (tm, tn, tk) step of the fused linear + cross-entropy forward."""
    if with_logits:
        out_ref, rowloss_ref, acc_sc, m_sc, l_sc, p_sc = refs
    else:
        out_ref = None
        rowloss_ref, acc_sc, m_sc, l_sc, p_sc = refs

    # Hoist every program_id read to the top level; never bind these
    # primitives inside a pl.when body (breaks lowering / interpret mode).
    i = pl.program_id(0)
    j = pl.program_id(1)
    k = pl.program_id(2)

    # ---- reset running softmax stats at the start of each row tile ----
    @pl.when((j == 0) & (k == 0))
    def _():
        m_sc[...] = jnp.full(m_sc.shape, -jnp.inf, m_sc.dtype)
        l_sc[...] = jnp.zeros_like(l_sc)
        p_sc[...] = jnp.zeros_like(p_sc)

    # ---- MXU matmul: (tm, tk) @ (tk, tn) with f32 accumulation over k ----
    partial_dot = jnp.dot(x_ref[...], w_ref[...],
                          preferred_element_type=jnp.float32)
    if nk == 1:
        acc_sc[...] = partial_dot
    else:
        @pl.when(k == 0)
        def _():
            acc_sc[...] = jnp.zeros_like(acc_sc)
        acc_sc[...] += partial_dot

    # ---- epilogue once the full-D logits tile is accumulated ----
    def epilogue():
        logits = acc_sc[...]                                   # (tm, tn) f32
        tm, tn = logits.shape
        if with_logits:
            out_ref[...] = logits.astype(out_ref.dtype)

        # One local lane iota shared by the padding mask and the label pick.
        local_ids = jax.lax.broadcasted_iota(jnp.int32, (tm, tn), 1)

        if classes_padded:
            # Only the last class tile has padded columns; on interior tiles
            # the threshold degenerates to tn (everything valid).
            valid_cols = jnp.where(j == nc - 1, n_classes - j * tn, tn)
            masked = jnp.where(local_ids < valid_cols, logits, -jnp.inf)
        else:
            masked = logits

        # Online (flash) logsumexp across class tiles.
        m_new = jnp.maximum(m_sc[...], jnp.max(masked, axis=-1, keepdims=True))
        alpha = jnp.exp(m_sc[...] - m_new)
        p = jnp.exp(masked - m_new)
        l_sc[...] = alpha * l_sc[...] + jnp.sum(p, axis=-1, keepdims=True)
        m_sc[...] = m_new

        # Picked (label) logit: local-lane compare, no one-hot matmul.
        hit = local_ids == (lbl_ref[...] - j * tn)             # (tm,tn) vs (tm,1)
        p_sc[...] += jnp.sum(jnp.where(hit, logits, 0.0), axis=-1, keepdims=True)

        # Finalize per-row loss on the last class tile.
        @pl.when(j == nc - 1)
        def _():
            lse = jnp.log(l_sc[...]) + m_sc[...]               # (tm, 1)
            row_loss = lse - p_sc[...]
            if rows_padded:
                row_ids = i * tm + jax.lax.broadcasted_iota(
                    jnp.int32, (tm, 1), 0)
                row_loss = jnp.where(row_ids < n_rows, row_loss, 0.0)
            rowloss_ref[...] = row_loss

    if nk == 1:
        epilogue()
    else:
        pl.when(k == nk - 1)(epilogue)


def linear_ce(x, weight, labels, *, tm=512, tn=None, tk=None,
              return_logits=True, vmem_limit_bytes=None):
    """Forward of LinearCE: returns (x @ W, mean CE loss) (or loss only)."""
    B, D = x.shape
    D2, C = weight.shape
    assert D == D2, "x / weight contracting dims differ"

    # --- tile selection (lane-dense, padding-avoiding where possible) ---
    tm = _round_up(min(tm, _round_up(B, 8)), 8)
    if tn is None:
        tn = _pick_class_tile(C)
    tn = _round_up(min(tn, _round_up(C, 128)), 128)
    if tk is None:
        tk = _pick_k_tile(D)
    if tk >= D:
        tk = D                                    # single full-D K block
    else:
        tk = _round_up(tk, 128)
        if tk >= D:
            tk = D

    B_pad = _round_up(B, tm)
    C_pad = _round_up(C, tn)
    D_pad = _round_up(D, tk)

    # --- pad only when strictly needed (avoids hidden HBM copies of W) ---
    x_p = x
    if (B_pad, D_pad) != (B, D):
        x_p = jnp.pad(x, ((0, B_pad - B), (0, D_pad - D)))
    w_p = weight
    if (D_pad, C_pad) != (D, C):
        # Falls through only when no 128-multiple tile divides C / D.
        w_p = jnp.pad(weight, ((0, D_pad - D), (0, C_pad - C)))
    lbl_p = labels.astype(jnp.int32)
    if B_pad != B:
        lbl_p = jnp.pad(lbl_p, (0, B_pad - B))
    lbl_p = lbl_p.reshape(B_pad, 1)

    nb, nc, nk = B_pad // tm, C_pad // tn, D_pad // tk

    kernel = functools.partial(
        _linear_ce_kernel,
        nc=nc, nk=nk, n_rows=B, n_classes=C,
        rows_padded=(B_pad != B), classes_padded=(C_pad != C),
        with_logits=return_logits)

    rowloss_shape = jax.ShapeDtypeStruct((B_pad, 1), jnp.float32)
    rowloss_spec = pl.BlockSpec((tm, 1), lambda i, j, k: (i, 0))
    if return_logits:
        out_shape = (jax.ShapeDtypeStruct((B_pad, C_pad), x.dtype),
                     rowloss_shape)
        out_specs = (pl.BlockSpec((tm, tn), lambda i, j, k: (i, j)),
                     rowloss_spec)
    else:
        out_shape = rowloss_shape
        out_specs = rowloss_spec

    if vmem_limit_bytes is None:
        vmem_limit_bytes = _default_vmem_limit()

    call = pl.pallas_call(
        kernel,
        out_shape=out_shape,
        grid_spec=pltpu.PrefetchScalarGridSpec(
            num_scalar_prefetch=0,
            grid=(nb, nc, nk),
            in_specs=[
                pl.BlockSpec((tm, tk), lambda i, j, k: (i, k)),   # x tile
                pl.BlockSpec((tk, tn), lambda i, j, k: (k, j)),   # W tile
                pl.BlockSpec((tm, 1), lambda i, j, k: (i, 0)),    # labels
            ],
            out_specs=out_specs,
            scratch_shapes=[
                pltpu.VMEM((tm, tn), jnp.float32),   # logits accumulator
                pltpu.VMEM((tm, 1), jnp.float32),    # running max
                pltpu.VMEM((tm, 1), jnp.float32),    # running sum-exp
                pltpu.VMEM((tm, 1), jnp.float32),    # picked (label) logit
            ],
        ),
        compiler_params=pltpu.CompilerParams(
            dimension_semantics=("parallel", "arbitrary", "arbitrary"),
            vmem_limit_bytes=vmem_limit_bytes,
        ),
    )

    if return_logits:
        out_p, row_loss = call(x_p, w_p, lbl_p)
        out = out_p if (B_pad, C_pad) == (B, C) else out_p[:B, :C]
    else:
        row_loss = call(x_p, w_p, lbl_p)
        out = None

    loss = jnp.sum(row_loss) / B   # padded rows were zeroed in the kernel
    if return_logits:
        return out, loss
    return loss


if __name__ == "__main__":
    base_key = jax.random.PRNGKey(0)

    def _check(B, D, C, tag, **tile_kw):
        kx, kwt, kl = jax.random.split(jax.random.fold_in(base_key, tag), 3)
        x = jax.random.normal(kx, (B, D), dtype=jnp.float32)
        limit = math.sqrt(6.0 / (D + C))   # xavier_uniform_ (fan_in=D, fan_out=C)
        w = jax.random.uniform(kwt, (D, C), dtype=jnp.float32,
                               minval=-limit, maxval=limit)
        labels = jax.random.randint(kl, (B,), 0, C, dtype=jnp.int32)

        out, loss = linear_ce(x, w, labels, **tile_kw)
        out = jax.block_until_ready(out)
        loss = jax.block_until_ready(loss)

        # Reference: plain JAX mm + mean cross-entropy (torch semantics).
        ref_logits = x @ w
        ref_lse = jax.scipy.special.logsumexp(ref_logits, axis=-1)
        ref_loss = jnp.mean(ref_lse - ref_logits[jnp.arange(B), labels])
        assert out.shape == (B, C), "output shape mismatch"
        assert jnp.allclose(out, ref_logits, atol=1e-3, rtol=1e-3), "logits mismatch"
        assert jnp.allclose(loss, ref_loss, atol=1e-3, rtol=1e-3), "loss mismatch"

        # Loss-only mode (skips the (B, C) logits writeback).
        loss_only = jax.block_until_ready(
            linear_ce(x, w, labels, return_logits=False, **tile_kw))
        assert jnp.allclose(loss_only, ref_loss, atol=1e-3, rtol=1e-3), \
            "loss-only mismatch"

    # Tiny single-tile shape (matches the module's toy scale).
    _check(B=8, D=32, C=16, tag=1)
    # Row + class padding with streamed class tiles (nc=3), full-D K block.
    _check(B=10, D=48, C=300, tag=2, tn=128)
    # Multi-tile in every grid axis: nb=3, nc=3, nk=2 (exercises K-tiling).
    _check(B=24, D=256, C=384, tag=3, tm=8, tn=128, tk=128)

    print("KERNEL_OK")
</pallas_src>

<mosaic_0001>
module attributes {stable_mosaic.version = 11 : i64} {
  func.func @_linear_ce_kernel(%arg0: i32, %arg1: i32, %arg2: i32, %arg3: memref<8x32xf32, #tpu.memory_space<vmem>>, %arg4: memref<32x128xf32, #tpu.memory_space<vmem>>, %arg5: memref<8x1xi32, #tpu.memory_space<vmem>>, %arg6: memref<8x128xf32, #tpu.memory_space<vmem>>, %arg7: memref<8x1xf32, #tpu.memory_space<vmem>>, %arg8: memref<8x128xf32, #tpu.memory_space<vmem>>, %arg9: memref<8x1xf32, #tpu.memory_space<vmem>>, %arg10: memref<8x1xf32, #tpu.memory_space<vmem>>, %arg11: memref<8x1xf32, #tpu.memory_space<vmem>>) attributes {dimension_semantics = [#tpu.dimension_semantics<parallel>, #tpu.dimension_semantics<arbitrary>, #tpu.dimension_semantics<arbitrary>], iteration_bounds = array<i64: 1, 1, 1>, scalar_prefetch = 0 : i64, scratch_operands = 4 : i64, tpu.core_type = #tpu.core_type<tc>, window_params = [{transform_indices = @transform_0, window_bounds = array<i64: 8, 32>}, {transform_indices = @transform_1, window_bounds = array<i64: 32, 128>}, {transform_indices = @transform_2, window_bounds = array<i64: 8, 1>}, {transform_indices = @transform_3, window_bounds = array<i64: 8, 128>}, {transform_indices = @transform_4, window_bounds = array<i64: 8, 1>}]} {
    %c0_i32 = arith.constant 0 : i32
    %0 = arith.cmpi eq, %arg1, %c0_i32 : i32
    %c0_i32_0 = arith.constant 0 : i32
    %1 = arith.cmpi eq, %arg2, %c0_i32_0 : i32
    %2 = arith.andi %0, %1 : i1
    %3 = arith.extui %2 : i1 to i32
    %c0_i32_1 = arith.constant 0 : i32
    %4 = arith.cmpi ne, %3, %c0_i32_1 : i32
    scf.if %4 {
      %cst_37 = arith.constant 0xFF800000 : f32
      %53 = vector.broadcast %cst_37 : f32 to vector<8x1xf32>
      %c0_38 = arith.constant 0 : index
      %c0_39 = arith.constant 0 : index
      %54 = vector.load %arg9[%c0_38, %c0_39] : memref<8x1xf32, #tpu.memory_space<vmem>>, vector<8x1xf32>
      tpu.vector_store %arg9[%c0_38, %c0_39], %53 {strides = array<i32>} : memref<8x1xf32, #tpu.memory_space<vmem>>, vector<8x1xf32>,
      %cst_40 = arith.constant 0.000000e+00 : f32
      %55 = vector.broadcast %cst_40 : f32 to vector<8x1xf32>
      %c0_41 = arith.constant 0 : index
      %c0_42 = arith.constant 0 : index
      %56 = vector.load %arg10[%c0_41, %c0_42] : memref<8x1xf32, #tpu.memory_space<vmem>>, vector<8x1xf32>
      tpu.vector_store %arg10[%c0_41, %c0_42], %55 {strides = array<i32>} : memref<8x1xf32, #tpu.memory_space<vmem>>, vector<8x1xf32>,
      %cst_43 = arith.constant 0.000000e+00 : f32
      %57 = vector.broadcast %cst_43 : f32 to vector<8x1xf32>
      %c0_44 = arith.constant 0 : index
      %c0_45 = arith.constant 0 : index
      %58 = vector.load %arg11[%c0_44, %c0_45] : memref<8x1xf32, #tpu.memory_space<vmem>>, vector<8x1xf32>
      tpu.vector_store %arg11[%c0_44, %c0_45], %57 {strides = array<i32>} : memref<8x1xf32, #tpu.memory_space<vmem>>, vector<8x1xf32>,
    } else {
    }
    %c0 = arith.constant 0 : index
    %c0_2 = arith.constant 0 : index
    %5 = vector.load %arg3[%c0, %c0_2] : memref<8x32xf32, #tpu.memory_space<vmem>>, vector<8x32xf32>
    %c0_3 = arith.constant 0 : index
    %c0_4 = arith.constant 0 : index
    %6 = vector.load %arg4[%c0_3, %c0_4] : memref<32x128xf32, #tpu.memory_space<vmem>>, vector<32x128xf32>
    %cst = arith.constant dense<0.000000e+00> : vector<8x128xf32>
    %7 = tpu.matmul %5, %6, %cst {dimension_numbers = #tpu.dot_dimension_numbers<[1], [0], [0], [1], [0, 0, 1, 1], [], []>} : vector<8x32xf32>, vector<32x128xf32>, vector<8x128xf32> -> vector<8x128xf32>
    %c0_5 = arith.constant 0 : index
    %c0_6 = arith.constant 0 : index
    %8 = vector.load %arg8[%c0_5, %c0_6] : memref<8x128xf32, #tpu.memory_space<vmem>>, vector<8x128xf32>
    tpu.vector_store %arg8[%c0_5, %c0_6], %7 {strides = array<i32>} : memref<8x128xf32, #tpu.memory_space<vmem>>, vector<8x128xf32>,
    %c0_7 = arith.constant 0 : index
    %c0_8 = arith.constant 0 : index
    %9 = vector.load %arg8[%c0_7, %c0_8] : memref<8x128xf32, #tpu.memory_space<vmem>>, vector<8x128xf32>
    %c0_9 = arith.constant 0 : index
    %c0_10 = arith.constant 0 : index
    %10 = vector.load %arg6[%c0_9, %c0_10] : memref<8x128xf32, #tpu.memory_space<vmem>>, vector<8x128xf32>
    tpu.vector_store %arg6[%c0_9, %c0_10], %9 {strides = array<i32>} : memref<8x128xf32, #tpu.memory_space<vmem>>, vector<8x128xf32>,
    %11 = tpu.iota {dimensions = array<i32: 1>} : vector<8x128xi32>
    %c0_i32_11 = arith.constant 0 : i32
    %12 = arith.cmpi eq, %arg1, %c0_i32_11 : i32
    %c128_i32 = arith.constant 128 : i32
    %13 = arith.muli %arg1, %c128_i32 : i32
    %c16_i32 = arith.constant 16 : i32
    %14 = arith.subi %c16_i32, %13 : i32
    %c128_i32_12 = arith.constant 128 : i32
    %15 = arith.select %12, %14, %c128_i32_12 : i32
    %16 = vector.broadcast %15 : i32 to vector<8x128xi32>
    %17 = arith.cmpi slt, %11, %16 : vector<8x128xi32>
    %cst_13 = arith.constant 0xFF800000 : f32
    %18 = vector.broadcast %cst_13 : f32 to vector<8x128xf32>
    %19 = arith.select %17, %9, %18 : vector<8x128xi1>, vector<8x128xf32>
    %c0_14 = arith.constant 0 : index
    %c0_15 = arith.constant 0 : index
    %20 = vector.load %arg9[%c0_14, %c0_15] : memref<8x1xf32, #tpu.memory_space<vmem>>, vector<8x1xf32>
    %cst_16 = arith.constant dense<0xFF800000> : vector<8xf32>
    %21 = vector.multi_reduction <maximumf>, %19, %cst_16 [1] : vector<8x128xf32> to vector<8xf32>
    %22 = vector.shape_cast %21 : vector<8xf32> to vector<8x1xf32>
    %23 = arith.maximumf %20, %22 : vector<8x1xf32>
    %c0_17 = arith.constant 0 : index
    %c0_18 = arith.constant 0 : index
    %24 = vector.load %arg9[%c0_17, %c0_18] : memref<8x1xf32, #tpu.memory_space<vmem>>, vector<8x1xf32>
    %25 = arith.subf %24, %23 : vector<8x1xf32>
    %26 = math.exp %25 : vector<8x1xf32>
    %27 = vector.broadcast %23 : vector<8x1xf32> to vector<8x128xf32>
    %28 = arith.subf %19, %27 : vector<8x128xf32>
    %29 = math.exp %28 : vector<8x128xf32>
    %c0_19 = arith.constant 0 : index
    %c0_20 = arith.constant 0 : index
    %30 = vector.load %arg10[%c0_19, %c0_20] : memref<8x1xf32, #tpu.memory_space<vmem>>, vector<8x1xf32>
    %31 = arith.mulf %26, %30 : vector<8x1xf32>
    %cst_21 = arith.constant dense<0.000000e+00> : vector<8xf32>
    %32 = vector.multi_reduction <add>, %29, %cst_21 [1] : vector<8x128xf32> to vector<8xf32>
    %33 = vector.shape_cast %32 : vector<8xf32> to vector<8x1xf32>
    %34 = arith.addf %31, %33 : vector<8x1xf32>
    %c0_22 = arith.constant 0 : index
    %c0_23 = arith.constant 0 : index
    %35 = vector.load %arg10[%c0_22, %c0_23] : memref<8x1xf32, #tpu.memory_space<vmem>>, vector<8x1xf32>
    tpu.vector_store %arg10[%c0_22, %c0_23], %34 {strides = array<i32>} : memref<8x1xf32, #tpu.memory_space<vmem>>, vector<8x1xf32>,
    %c0_24 = arith.constant 0 : index
    %c0_25 = arith.constant 0 : index
    %36 = vector.load %arg9[%c0_24, %c0_25] : memref<8x1xf32, #tpu.memory_space<vmem>>, vector<8x1xf32>
    tpu.vector_store %arg9[%c0_24, %c0_25], %23 {strides = array<i32>} : memref<8x1xf32, #tpu.memory_space<vmem>>, vector<8x1xf32>,
    %c0_26 = arith.constant 0 : index
    %c0_27 = arith.constant 0 : index
    %37 = vector.load %arg5[%c0_26, %c0_27] : memref<8x1xi32, #tpu.memory_space<vmem>>, vector<8x1xi32>
    %c128_i32_28 = arith.constant 128 : i32
    %38 = arith.muli %arg1, %c128_i32_28 : i32
    %39 = vector.broadcast %38 : i32 to vector<8x1xi32>
    %40 = arith.subi %37, %39 : vector<8x1xi32>
    %41 = vector.broadcast %40 : vector<8x1xi32> to vector<8x128xi32>
    %42 = arith.cmpi eq, %11, %41 : vector<8x128xi32>
    %c0_29 = arith.constant 0 : index
    %c0_30 = arith.constant 0 : index
    %43 = vector.load %arg11[%c0_29, %c0_30] : memref<8x1xf32, #tpu.memory_space<vmem>>, vector<8x1xf32>
    %cst_31 = arith.constant 0.000000e+00 : f32
    %44 = vector.broadcast %cst_31 : f32 to vector<8x128xf32>
    %45 = arith.select %42, %9, %44 : vector<8x128xi1>, vector<8x128xf32>
    %cst_32 = arith.constant dense<0.000000e+00> : vector<8xf32>
    %46 = vector.multi_reduction <add>, %45, %cst_32 [1] : vector<8x128xf32> to vector<8xf32>
    %47 = vector.shape_cast %46 : vector<8xf32> to vector<8x1xf32>
    %48 = arith.addf %43, %47 : vector<8x1xf32>
    %c0_33 = arith.constant 0 : index
    %c0_34 = arith.constant 0 : index
    %49 = vector.load %arg11[%c0_33, %c0_34] : memref<8x1xf32, #tpu.memory_space<vmem>>, vector<8x1xf32>
    tpu.vector_store %arg11[%c0_33, %c0_34], %48 {strides = array<i32>} : memref<8x1xf32, #tpu.memory_space<vmem>>, vector<8x1xf32>,
    %c0_i32_35 = arith.constant 0 : i32
    %50 = arith.cmpi eq, %arg1, %c0_i32_35 : i32
    %51 = arith.extui %50 : i1 to i32
    %c0_i32_36 = arith.constant 0 : i32
    %52 = arith.cmpi ne, %51, %c0_i32_36 : i32
    scf.if %52 {
      %c0_37 = arith.constant 0 : index
      %c0_38 = arith.constant 0 : index
      %53 = vector.load %arg10[%c0_37, %c0_38] : memref<8x1xf32, #tpu.memory_space<vmem>>, vector<8x1xf32>
      %54 = math.log %53 : vector<8x1xf32>
      %c0_39 = arith.constant 0 : index
      %c0_40 = arith.constant 0 : index
      %55 = vector.load %arg9[%c0_39, %c0_40] : memref<8x1xf32, #tpu.memory_space<vmem>>, vector<8x1xf32>
      %56 = arith.addf %54, %55 : vector<8x1xf32>
      %c0_41 = arith.constant 0 : index
      %c0_42 = arith.constant 0 : index
      %57 = vector.load %arg11[%c0_41, %c0_42] : memref<8x1xf32, #tpu.memory_space<vmem>>, vector<8x1xf32>
      %58 = arith.subf %56, %57 : vector<8x1xf32>
      %c0_43 = arith.constant 0 : index
      %c0_44 = arith.constant 0 : index
      %59 = vector.load %arg7[%c0_43, %c0_44] : memref<8x1xf32, #tpu.memory_space<vmem>>, vector<8x1xf32>
      tpu.vector_store %arg7[%c0_43, %c0_44], %58 {strides = array<i32>} : memref<8x1xf32, #tpu.memory_space<vmem>>, vector<8x1xf32>,
    } else {
    }
    return
  }
  func.func @transform_0(%arg0: i32, %arg1: i32, %arg2: i32) -> (i32, i32) {
    %c0_i32 = arith.constant 0 : i32
    return %arg0, %arg2 : i32, i32
  }
  func.func @transform_1(%arg0: i32, %arg1: i32, %arg2: i32) -> (i32, i32) {
    %c0_i32 = arith.constant 0 : i32
    return %arg2, %arg1 : i32, i32
  }
  func.func @transform_2(%arg0: i32, %arg1: i32, %arg2: i32) -> (i32, i32) {
    %c0_i32 = arith.constant 0 : i32
    %c0_i32_0 = arith.constant 0 : i32
    return %arg0, %c0_i32 : i32, i32
  }
  func.func @transform_3(%arg0: i32, %arg1: i32, %arg2: i32) -> (i32, i32) {
    %c0_i32 = arith.constant 0 : i32
    return %arg0, %arg1 : i32, i32
  }
  func.func @transform_4(%arg0: i32, %arg1: i32, %arg2: i32) -> (i32, i32) {
    %c0_i32 = arith.constant 0 : i32
    %c0_i32_0 = arith.constant 0 : i32
    return %arg0, %c0_i32 : i32, i32
  }
}

</mosaic_0001>

<llo_original>
// kernel: tpu_custom_call.1
$region0: #{tpu_custom_call.1}
  #allocation0 [shape = 'u32[]', space=smem, size = 0x4, offset = 0x4, fixed_abs, tag = 'smem constant byte address 0x4 - core index']
  #allocation1 [shape = 'u32[144,128]{1,0:T(1,128)}', space=vmem, size = 0x12000, scoped, tag = 'internal scratch']
  #allocation2 [shape = 'f32[8,128]{1,0:T(8,128)}', space=vmem, size = 0x1000, scoped, tag = 'scratch operand']
  #allocation3 [shape = 'f32[8,1]{1,0:T(8,128)}', space=vmem, size = 0x1000, scoped, tag = 'scratch operand']
  #allocation4 [shape = 'f32[8,1]{1,0:T(8,128)}', space=vmem, size = 0x1000, scoped, tag = 'scratch operand']
  #allocation5 [shape = 'f32[8,1]{1,0:T(8,128)}', space=vmem, size = 0x1000, scoped, tag = 'scratch operand']
  %s0 = inlined_call_operand.vmem [shape: f32[8,32], index: 0, kind: input, shape index: {}]
  %s1 = inlined_call_operand.hbm [shape: f32[32,128], index: 1, kind: input, shape index: {}]
  %s2 = inlined_call_operand.vmem [shape: s32[8,1], index: 2, kind: input, shape index: {}]
  %s3 = inlined_call_operand.hbm [shape: f32[8,128], index: 3, kind: output, shape index: {0}]
  %s4 = inlined_call_operand.vmem [shape: f32[8,1], index: 4, kind: output, shape index: {1}]
  %5 = xla_tuple %s3, %s4
  %s6 = sld [smem:[#allocation0]]
  $region42: #{tpu_custom_call.1} parent=0
    _
  %s8 = ssub.s32 1, %s6
  %s9 = scalar_select 0, %s8, %s6
  $region1: #{tpu_custom_call.1} parent=0
    #allocation6 [shape = 'u8[16384]{0}', space=vmem, size = 0x4000, scoped, tag = 'input window, operand 1, single buffered']
    #allocation7 [shape = 's32[1]{0}', space=sflag, size = 0x4, scoped, tag = 'scoped memory for tpu_custom_call.1']
    #allocation8 [shape = 's32[1]{0}', space=sflag, size = 0x4, scoped, tag = 'scoped memory for tpu_custom_call.1']
    #allocation9 [shape = 'u8[4096]{0}', space=vmem, size = 0x1000, scoped, tag = 'output window, operand 0, single buffered']
    %10 = vsyncpa [#allocation7], 0
    %11 = vsyncpa [#allocation8], 0
    // Predicated region
    $region2: #{tpu_custom_call.1} parent=1 // pred_check
      _
    $region3: #{tpu_custom_call.1} parent=1 // pred_check_branch
      %13 = sbr.rel (0) target = $region5
    $region4: #{tpu_custom_call.1} parent=1 // pred_region
      _
    $region5: #{tpu_custom_call.1} parent=1 // pred_fallthru
      _
    // Predicated region
    $region6: #{tpu_custom_call.1} parent=1 // pred_check
      _
    $region7: #{tpu_custom_call.1} parent=1 // pred_check_branch
      %15 = sbr.rel (0) target = $region9
    $region8: #{tpu_custom_call.1} parent=1 // pred_region
      %s17 = ssub.s32 512, 512
      %18 = vsyncadd [#allocation7], %s17
      %s19 = sshll.u32 [#allocation6], 4
      %s20 = int_to_ptr.vmem [resolvable:$true] %s19
      %25 = dma.hbm_to_vmem [thread:$0]  %s1, 512, %s20, [#allocation7], 128, 128, 8
    $region9: #{tpu_custom_call.1} parent=1 // pred_fallthru
      _
    // Predicated region
    $region10: #{tpu_custom_call.1} parent=1 // pred_check
      _
    $region11: #{tpu_custom_call.1} parent=1 // pred_check_branch
      %27 = sbr.rel (0) target = $region13
    $region12: #{tpu_custom_call.1} parent=1 // pred_region
      _
    $region13: #{tpu_custom_call.1} parent=1 // pred_fallthru
      _
    // Predicated region
    $region14: #{tpu_custom_call.1} parent=1 // pred_check
      _
    $region15: #{tpu_custom_call.1} parent=1 // pred_check_branch
      %29 = sbr.rel (0) target = $region17
    $region16: #{tpu_custom_call.1} parent=1 // pred_region
      %30 = dma.done [#allocation7], 512
    $region17: #{tpu_custom_call.1} parent=1 // pred_fallthru
      _
    %p31 = scmp.eq.s32.totalorder 0, 0
    %p32 = scmp.eq.s32.totalorder 0, 0
    %p33 = pnand %p31, %p32
    %p34 = pneg %p33
    // Predicated region
    $region18: #{tpu_custom_call.1} parent=1 // pred_check
      _
    $region19: #{tpu_custom_call.1} parent=1 // pred_check_branch
      %36 = sbr.rel (%p33) target = $region21
    $region20: #{tpu_custom_call.1} parent=1 // pred_region
      %vm37 = vcmask 7168
      %38 = vst.msk [vmem:[#allocation3] sm:$0xff] %vm37, -inf
      %39 = vst.msk [vmem:[#allocation4] sm:$0xff] %vm37, 0.0
      %40 = vst.msk [vmem:[#allocation5] sm:$0xff] %vm37, 0.0
    $region21: #{tpu_custom_call.1} parent=1 // pred_fallthru
      _
    %v41 = vld [vmem:[%s0] sm:$0xff]
    %v42 = vld [vmem:[#allocation6] sm:$0xff]
    %v43 = vld [vmem:[#allocation6 + $0x8] sm:$0xff]
    %v44 = vld [vmem:[#allocation6 + $0x10] sm:$0xff]
    %v45 = vld [vmem:[#allocation6 + $0x18] sm:$0xff]
    %vm46 = vcmask 261120
    %v48 = vsel %vm46, %v41, 0
    %50 = vmatprep.subr.mxu0 0.0
    %51 = vmatpush1.msra.mxu0 %v42
    %52 = vmatprep.subr.mxu0 0.0
    %53 = vmatpush1.msra.mxu0 %v43
    %54 = vmatprep.subr.mxu0 0.0
    %55 = vmatpush1.msra.mxu0 %v44
    %56 = vmatprep.subr.mxu0 0.0
    %57 = vmatpush1.msra.mxu0 %v45
    %58 = vmatprep.subr.mxu0 0.0
    %59 = vmatpush1.msra.mxu0 0.0
    %60 = vmatprep.subr.mxu0 0.0
    %61 = vmatpush1.msra.mxu0 0.0
    %62 = vmatprep.subr.mxu0 0.0
    %63 = vmatpush1.msra.mxu0 0.0
    %64 = vmatprep.subr.mxu0 0.0
    %65 = vmatpush1.msra.mxu0 0.0
    %66 = vmatprep.subr.mxu0 0.0
    %67 = vmatpush1.msra.mxu0 0.0
    %68 = vmatprep.subr.mxu0 0.0
    %69 = vmatpush1.msra.mxu0 0.0
    %70 = vmatprep.subr.mxu0 0.0
    %71 = vmatpush1.msra.mxu0 0.0
    %72 = vmatprep.subr.mxu0 0.0
    %73 = vmatpush1.msra.mxu0 0.0
    %74 = vmatprep.subr.mxu0 0.0
    %75 = vmatpush1.msra.mxu0 0.0
    %76 = vmatprep.subr.mxu0 0.0
    %77 = vmatpush1.msra.mxu0 0.0
    %78 = vmatprep.subr.mxu0 0.0
    %79 = vmatpush1.msra.mxu0 0.0
    %80 = vmatprep.subr.mxu0 0.0
    %81 = vmatpush1.msra.mxu0 0.0
    %82 = vmatprep.subr.mxu0 0.0
    %83 = vmatpush1.msra.mxu0 0.0
    %84 = vmatprep.subr.mxu0 0.0
    %85 = vmatpush1.msra.mxu0 0.0
    %86 = vmatprep.subr.mxu0 0.0
    %87 = vmatpush1.msra.mxu0 0.0
    %88 = vmatprep.subr.mxu0 0.0
    %89 = vmatpush1.msra.mxu0 0.0
    %90 = vmatprep.subr.mxu0 0.0
    %91 = vmatpush1.msra.mxu0 0.0
    %92 = vmatprep.subr.mxu0 0.0
    %93 = vmatpush1.msra.mxu0 0.0
    %94 = vmatprep.subr.mxu0 0.0
    %95 = vmatpush1.msra.mxu0 0.0
    %96 = vmatprep.subr.mxu0 0.0
    %97 = vmatpush1.msra.mxu0 0.0
    %98 = vmatprep.subr.mxu0 0.0
    %99 = vmatpush1.msra.mxu0 0.0
    %100 = vmatprep.subr.mxu0 0.0
    %101 = vmatpush1.msra.mxu0 0.0
    %102 = vmatprep.subr.mxu0 0.0
    %103 = vmatpush1.msra.mxu0 0.0
    %104 = vmatprep.subr.mxu0 0.0
    %105 = vmatpush1.msra.mxu0 0.0
    %106 = vmatprep.subr.mxu0 0.0
    %107 = vmatpush1.msra.mxu0 0.0
    %108 = vmatprep.subr.mxu0 0.0
    %109 = vmatpush1.msra.mxu0 0.0
    %110 = vmatprep.subr.mxu0 0.0
    %111 = vmatpush1.msra.mxu0 0.0
    %112 = vmatprep.subr.mxu0 0.0
    %113 = vmatpush1.msra.mxu0 0.0
    %114 = vmatprep.mubr.f32.mxu0 0.0
    %115 = vmatmul.mubr.f32.gmra.mrb[0].mxu0 %v48
    %v116 = vpop.f32.mrb[0].mxu0
    %v117 = vadd.f32 0.0, %v116
    %v118 = vpop.f32.mrb[0].mxu0
    %119 = vdwg.mxu0
    %120 = vst [vmem:[#allocation2] sm:$0xff] %v117
    %v121 = vld [vmem:[#allocation2] sm:$0xff]
    %122 = vst [vmem:[#allocation9] sm:$0xff] %v121
    %v123 = vlaneseq
    %v124 = vand.u32 %v123, 127
    %s125 = smul.u32 0, 128
    %s126 = ssub.s32 16, %s125
    %s127 = scalar_select %p31, %s126, 128
    %v128 = vstv %s127
    %vm129 = vcmp.lt.s32.totalorder %v124, %v128
    %v130 = vsel %vm129, %v121, -inf
    %v131 = vld [vmem:[#allocation3] sm:$0xff]
    %132 = vmax.xlane.f32.xlu0 %v130
    %v133 = vpop.xlane.xlu0 %132
    %v134 = vmax.f32 %v131, %v133
    %v135 = vsub.f32 %v131, %v134
    %v136 = vmul.f32 %v135, 1.442695
    %v137 = vpow.pop %v136
    %139 = vset.pattern.permute.xlu0 0
    %140 = vperm.xlu0 %139, %v134
    %v141 = vpop.permute.xlu0 %140
    %v143 = vsub.f32 %v130, %v141
    %v144 = vmul.f32 %v143, 1.442695
    %v145 = vpow.pop %v144
    %v146 = vld [vmem:[#allocation4] sm:$0xff]
    %v147 = vmul.f32 %v137, %v146
    %148 = vadd.xlane.f32.xlu0 %v145
    %v149 = vpop.xlane.xlu0 %148
    %v150 = vadd.f32 %v147, %v149
    %vm151 = vcmask 7168
    %152 = vst.msk [vmem:[#allocation4] sm:$0xff] %vm151, %v150
    %153 = vst.msk [vmem:[#allocation3] sm:$0xff] %vm151, %v134
    %v154 = vld [vmem:[%s2] sm:$0xff]
    %v155 = vstv %s125
    %v156 = vsub.s32 %v154, %v155
    %157 = vset.pattern.permute.xlu0 0
    %158 = vperm.xlu0 %157, %v156
    %v159 = vpop.permute.xlu0 %158
    %vm160 = vcmp.eq.s32.totalorder %v124, %v159
    %v161 = vld [vmem:[#allocation5] sm:$0xff]
    %v162 = vsel %vm160, %v121, 0.0
    %163 = vadd.xlane.f32.xlu0 %v162
    %v164 = vpop.xlane.xlu0 %163
    %v165 = vadd.f32 %v161, %v164
    %166 = vst.msk [vmem:[#allocation5] sm:$0xff] %vm151, %v165
    // Predicated region
    $region22: #{tpu_custom_call.1} parent=1 // pred_check
      %p167 = pneg %p31
    $region23: #{tpu_custom_call.1} parent=1 // pred_check_branch
      %169 = sbr.rel (%p167) target = $region25
    $region24: #{tpu_custom_call.1} parent=1 // pred_region
      %v170 = vld [vmem:[#allocation4] sm:$0xff]
      %v171 = vlog2.pop %v170
      %v172 = vmul.f32 %v171, 0.6931472
      %v173 = vld [vmem:[#allocation3] sm:$0xff]
      %v174 = vadd.f32 %v172, %v173
      %v175 = vld [vmem:[#allocation5] sm:$0xff]
      %v176 = vsub.f32 %v174, %v175
      %177 = vst.msk [vmem:[%s4] sm:$0xff] %vm151, %v176
    $region25: #{tpu_custom_call.1} parent=1 // pred_fallthru
      _
    // Predicated region
    $region26: #{tpu_custom_call.1} parent=1 // pred_check
      _
    $region27: #{tpu_custom_call.1} parent=1 // pred_check_branch
      %179 = sbr.rel (0) target = $region29
    $region28: #{tpu_custom_call.1} parent=1 // pred_region
      %s181 = ssub.s32 128, 128
      %182 = vsyncadd [#allocation8], %s181
      %s184 = sshll.u32 [#allocation9], 4
      %s185 = int_to_ptr.vmem [resolvable:$true] %s184
      %187 = dma.vmem_to_hbm [thread:$0]  %s185, 128, %s3, [#allocation8]
    $region29: #{tpu_custom_call.1} parent=1 // pred_fallthru
      _
    // Predicated region
    $region30: #{tpu_custom_call.1} parent=1 // pred_check
      _
    $region31: #{tpu_custom_call.1} parent=1 // pred_check_branch
      %189 = sbr.rel (0) target = $region33
    $region32: #{tpu_custom_call.1} parent=1 // pred_region
      _
    $region33: #{tpu_custom_call.1} parent=1 // pred_fallthru
      _
    // Predicated region
    $region34: #{tpu_custom_call.1} parent=1 // pred_check
      _
    $region35: #{tpu_custom_call.1} parent=1 // pred_check_branch
      %191 = sbr.rel (0) target = $region37
    $region36: #{tpu_custom_call.1} parent=1 // pred_region
      %192 = dma.done [#allocation8], 128
    $region37: #{tpu_custom_call.1} parent=1 // pred_fallthru
      _
    // Predicated region
    $region38: #{tpu_custom_call.1} parent=1 // pred_check
      _
    $region39: #{tpu_custom_call.1} parent=1 // pred_check_branch
      %194 = sbr.rel (0) target = $region41
    $region40: #{tpu_custom_call.1} parent=1 // pred_region
      _
    $region41: #{tpu_custom_call.1} parent=1 // pred_fallthru
      _
    %195 = vsyncpa [#allocation7], 1
    %196 = vsyncpa [#allocation8], 1

</llo_original>
